<compile_context>
chip_gen: v7x
topology: tpu7x:2x2x1
jax: 0.10.0
libtpu: 0.0.40
codegen_flags: <defaults>
</compile_context>

<pallas_src>
import functools

import jax
import jax.numpy as jnp
from jax import lax
from jax.experimental import pallas as pl
from jax.experimental.pallas import tpu as pltpu

C_IN_IMG = 1            # channels per input image
C_IN = 2 * C_IN_IMG     # model input channels after cat([source, target], dim=1)
C_OUT = 3               # DVF channels (3D displacement field)
C_OUT_PAD = 8           # padded output channels (full sublane tile / MXU M dim)
K = 3                   # conv kernel size (padding=1 -> SAME)


# ---------------------------------------------------------------------------
# Pallas kernels
# ---------------------------------------------------------------------------
def _conv3d_mxu_kernel(w_ref, x_ref, o_ref):
    """Direct 3D conv for one batch element as a single MXU matmul.

    w_ref: (C_OUT_PAD, n_taps)      f32 VMEM  weights (+bias column, zero pad)
    x_ref: (1, n_taps, DHW_pad)     f32 VMEM  tap-shifted slabs (+ones, zero pad)
    o_ref: (1, C_OUT_PAD, DHW_pad)  f32 VMEM  output displacement field slabs
    """
    o_ref[0] = jnp.dot(w_ref[...], x_ref[0],
                       preferred_element_type=jnp.float32)


def _regularizer_kernel(d_ref, o_ref, *, bc_tile, D, H, W, inv_n):
    """Partial L2 regularizer over a tile of (b, c) displacement volumes.

    d_ref: (bc_tile, D, HW) f32 VMEM  lane-dense displacement volumes
    o_ref: (1, 8, 128)      f32 VMEM  partial sum at [0, 0, 0], zeros elsewhere
    inv_n: (1/count_dx, 1/count_dy, 1/count_dz) global normalizers (constants)
    """
    HW = H * W
    lane = lax.broadcasted_iota(jnp.int32, (D, HW), 1)
    sub = lax.broadcasted_iota(jnp.int32, (D, HW), 0)
    w_edge = (lane % W) == (W - 1)        # last column of each H row (wraps)
    h_edge = lane >= (H - 1) * W          # last H row of each D slice (wraps)
    d_edge = sub == (D - 1)               # last D slice (wraps)

    total = jnp.float32(0.0)
    for i in range(bc_tile):
        x = d_ref[i]                      # (D, HW), lane-dense
        # Neighbour differences via full-width XLU rolls + boundary masks:
        # no off-by-one lane/sublane slices, no masked partial vregs.
        dz = jnp.where(w_edge, 0.0, pltpu.roll(x, shift=HW - 1, axis=1) - x)
        dx = jnp.where(h_edge, 0.0, pltpu.roll(x, shift=HW - W, axis=1) - x)
        dy = jnp.where(d_edge, 0.0, pltpu.roll(x, shift=D - 1, axis=0) - x)
        total = total + (jnp.sum(dx * dx) * inv_n[0]
                         + jnp.sum(dy * dy) * inv_n[1]
                         + jnp.sum(dz * dz) * inv_n[2])

    # Lane-aligned (8, 128) output block; partial sum in element [0, 0].
    sub8 = lax.broadcasted_iota(jnp.int32, (8, 128), 0)
    lane128 = lax.broadcasted_iota(jnp.int32, (8, 128), 1)
    o_ref[0] = jnp.where((sub8 == 0) & (lane128 == 0), total, 0.0)


# ---------------------------------------------------------------------------
# Wrappers (layout plumbing stays in plain JAX)
# ---------------------------------------------------------------------------
def _tap_slabs_single(img):
    """img: (B, C_IN_IMG, D, H, W) -> list of 27*C_IN_IMG (B, D*H*W) f32 slabs.

    Shifted views of the zero-padded volume in (ci, kd, kh, kw) order so they
    line up with the flattened torch Conv3d weights.
    """
    B, c, D, H, W = img.shape
    xp = jnp.pad(img.astype(jnp.float32),
                 ((0, 0), (0, 0), (1, 1), (1, 1), (1, 1)))
    slabs = []
    for ci in range(c):
        for kd in range(K):
            for kh in range(K):
                for kw in range(K):
                    slabs.append(
                        xp[:, ci, kd:kd + D, kh:kh + H, kw:kw + W]
                        .reshape(B, D * H * W))
    return slabs


def registration_forward(source, target, weight, bias):
    """RegistrationModule.forward: flow = model(cat([source, target], dim=1)).

    The channel concat is never materialized; tap slabs are built directly
    from source (ci=0) and target (ci=1) in the same order as the weights.
    """
    B, c, D, H, W = source.shape
    assert c == C_IN_IMG and target.shape == source.shape
    DHW = D * H * W
    DHW_pad = -(-DHW // 128) * 128        # lane-dense (multiple of 128)

    # im2col tap slabs (wrapper-side layout plumbing).
    slabs = _tap_slabs_single(source) + _tap_slabs_single(target)
    n_conv_taps = len(slabs)                              # C_IN * 27 = 54
    slabs.append(jnp.ones((B, DHW), jnp.float32))         # bias tap
    n_real = len(slabs)
    n_taps = -(-n_real // 8) * 8                          # sublane multiple
    for _ in range(n_taps - n_real):
        slabs.append(jnp.zeros((B, DHW), jnp.float32))
    x_taps = jnp.stack(slabs, axis=1)                     # (B, n_taps, DHW)
    if DHW_pad != DHW:
        x_taps = jnp.pad(x_taps, ((0, 0), (0, 0), (0, DHW_pad - DHW)))

    # Weights as a small resident VMEM block: rows 0..2 real channels, bias
    # folded into column n_conv_taps, everything else zero.
    w_flat = weight.reshape(C_OUT, n_conv_taps).astype(jnp.float32)
    w_aug = jnp.zeros((C_OUT_PAD, n_taps), jnp.float32)
    w_aug = w_aug.at[:C_OUT, :n_conv_taps].set(w_flat)
    w_aug = w_aug.at[:C_OUT, n_conv_taps].set(bias.astype(jnp.float32))

    y = pl.pallas_call(
        _conv3d_mxu_kernel,
        out_shape=jax.ShapeDtypeStruct((B, C_OUT_PAD, DHW_pad), jnp.float32),
        grid=(B,),
        in_specs=[
            # Constant block index -> weights fetched once, stay resident.
            pl.BlockSpec((C_OUT_PAD, n_taps), lambda b: (0, 0)),
            pl.BlockSpec((1, n_taps, DHW_pad), lambda b: (b, 0, 0)),
        ],
        out_specs=pl.BlockSpec((1, C_OUT_PAD, DHW_pad), lambda b: (b, 0, 0)),
        # "parallel": the two v7x TensorCores split the batch; on v5e/v6e the
        # extra grid step costs ~0.35 us, negligible.  Blocks are <1 MB, far
        # under the 32 MiB scoped-VMEM default on every generation.
        compiler_params=pltpu.CompilerParams(
            dimension_semantics=("parallel",)),
    )(w_aug, x_taps)
    return y[:, :C_OUT, :DHW].reshape(B, C_OUT, D, H, W)


def registration_forward_backward(source, target, weight, bias):
    """RegistrationModule.forward_backward_flow_registration."""
    return (registration_forward(source, target, weight, bias),
            registration_forward(target, source, weight, bias))


def regularizer(disp, penalty="l2"):
    """RegistrationModule.regularizer(disp, penalty='l2')."""
    assert penalty == "l2"
    B, C, D, H, W = disp.shape
    HW = H * W
    BC = B * C
    d3 = disp.reshape(BC, D, HW).astype(jnp.float32)

    # Coarse tiles over the (b, c) axis: 2 parallel grid steps (both v7x TCs
    # contribute), capped by a VMEM budget for realistic volume sizes and by a
    # small unroll bound inside the kernel.
    vol_bytes = D * HW * 4
    max_tile_vmem = max(1, (8 * 1024 * 1024) // vol_bytes)
    bc_tile = max(1, min(max_tile_vmem, 8, -(-BC // 2)))
    n_steps = -(-BC // bc_tile)
    if n_steps * bc_tile != BC:
        d3 = jnp.pad(d3, ((0, n_steps * bc_tile - BC), (0, 0), (0, 0)))

    inv_n = (1.0 / (BC * D * (H - 1) * W),    # H-direction diffs (dx)
             1.0 / (BC * (D - 1) * H * W),    # D-direction diffs (dy)
             1.0 / (BC * D * H * (W - 1)))    # W-direction diffs (dz)

    kernel = functools.partial(_regularizer_kernel, bc_tile=bc_tile,
                               D=D, H=H, W=W, inv_n=inv_n)
    partials = pl.pallas_call(
        kernel,
        out_shape=jax.ShapeDtypeStruct((n_steps, 8, 128), jnp.float32),
        grid=(n_steps,),
        in_specs=[pl.BlockSpec((bc_tile, D, HW), lambda i: (i, 0, 0))],
        # Per-step partial-sum blocks (no shared accumulator -> no race under
        # "parallel"); each block is zero except element [0, 0].
        out_specs=pl.BlockSpec((1, 8, 128), lambda i: (i, 0, 0)),
        compiler_params=pltpu.CompilerParams(
            dimension_semantics=("parallel",)),
    )(d3)
    return jnp.sum(partials) / 3.0


# ---------------------------------------------------------------------------
# Main
# ---------------------------------------------------------------------------
if __name__ == "__main__":
    key = jax.random.PRNGKey(0)
    k1, k2, k3, k4 = jax.random.split(key, 4)

    B, D, H, W = 2, 8, 16, 16   # inshape = [8, 16, 16]
    source = jax.random.normal(k1, (B, C_IN_IMG, D, H, W), jnp.float32)
    target = jax.random.normal(k2, (B, C_IN_IMG, D, H, W), jnp.float32)

    # Deterministic synthetic "model" parameters (Conv3d(2 -> 3, k=3, pad=1)).
    weight = 0.1 * jax.random.normal(k3, (C_OUT, C_IN, K, K, K), jnp.float32)
    bias = 0.01 * jax.random.normal(k4, (C_OUT,), jnp.float32)

    # Forward: deformation field from source to target.
    flow = jax.block_until_ready(
        registration_forward(source, target, weight, bias))
    assert flow.shape == (B, C_OUT, D, H, W)

    # Correctness check vs. XLA's conv (same semantics as torch Conv3d, pad=1).
    # Tolerance accommodates the MXU's reduced-precision multiplicand passes
    # for f32 matmuls; structural errors would be O(0.1-1).
    x_cat = jnp.concatenate([source, target], axis=1)
    ref = lax.conv_general_dilated(
        x_cat, weight, window_strides=(1, 1, 1), padding="SAME",
        dimension_numbers=("NCDHW", "OIDHW", "NCDHW"),
    ) + bias.reshape(1, C_OUT, 1, 1, 1)
    err = float(jnp.max(jnp.abs(flow - ref)))
    assert err < 2e-2, f"conv3d mismatch (max abs err = {err})"

    # Forward/backward flow registration (exercises both directions).
    fwd, bwd = registration_forward_backward(source, target, weight, bias)
    jax.block_until_ready((fwd, bwd))

    # Regularizer kernel check.
    reg = jax.block_until_ready(regularizer(flow))
    dyr = (flow[:, :, 1:, :, :] - flow[:, :, :-1, :, :]) ** 2
    dxr = (flow[:, :, :, 1:, :] - flow[:, :, :, :-1, :]) ** 2
    dzr = (flow[:, :, :, :, 1:] - flow[:, :, :, :, :-1]) ** 2
    reg_ref = (jnp.mean(dxr) + jnp.mean(dyr) + jnp.mean(dzr)) / 3.0
    assert jnp.allclose(reg, reg_ref, atol=1e-5, rtol=1e-4), "regularizer mismatch"

    print("KERNEL_OK")
</pallas_src>

<mosaic_0001>
module attributes {stable_mosaic.version = 11 : i64} {
  func.func @_conv3d_mxu_kernel(%arg0: i32, %arg1: memref<8x56xf32, #tpu.memory_space<vmem>>, %arg2: memref<1x56x2048xf32, #tpu.memory_space<vmem>>, %arg3: memref<1x8x2048xf32, #tpu.memory_space<vmem>>) attributes {dimension_semantics = [#tpu.dimension_semantics<parallel>], iteration_bounds = array<i64: 2>, scalar_prefetch = 0 : i64, scratch_operands = 0 : i64, tpu.core_type = #tpu.core_type<tc>, window_params = [{pipeline_mode = #tpu.pipeline_mode<synchronous>, transform_indices = @transform_0, window_bounds = array<i64: 8, 56>}, {transform_indices = @transform_1, window_bounds = array<i64: 1, 56, 2048>}, {transform_indices = @transform_2, window_bounds = array<i64: 1, 8, 2048>}]} {
    %c0 = arith.constant 0 : index
    %c0_0 = arith.constant 0 : index
    %0 = vector.load %arg1[%c0, %c0_0] : memref<8x56xf32, #tpu.memory_space<vmem>>, vector<8x56xf32>
    %c0_1 = arith.constant 0 : index
    %c0_2 = arith.constant 0 : index
    %c0_3 = arith.constant 0 : index
    %1 = vector.load %arg2[%c0_1, %c0_2, %c0_3] : memref<1x56x2048xf32, #tpu.memory_space<vmem>>, vector<1x56x2048xf32>
    %2 = vector.shape_cast %1 : vector<1x56x2048xf32> to vector<56x2048xf32>
    %cst = arith.constant dense<0.000000e+00> : vector<8x2048xf32>
    %3 = tpu.matmul %0, %2, %cst {dimension_numbers = #tpu.dot_dimension_numbers<[1], [0], [0], [1], [0, 0, 1, 1], [], []>} : vector<8x56xf32>, vector<56x2048xf32>, vector<8x2048xf32> -> vector<8x2048xf32>
    %c0_4 = arith.constant 0 : index
    %c0_5 = arith.constant 0 : index
    %c0_6 = arith.constant 0 : index
    %4 = vector.load %arg3[%c0_4, %c0_5, %c0_6] : memref<1x8x2048xf32, #tpu.memory_space<vmem>>, vector<1x8x2048xf32>
    %5 = vector.shape_cast %4 : vector<1x8x2048xf32> to vector<8x2048xf32>
    %6 = vector.shape_cast %3 : vector<8x2048xf32> to vector<1x8x2048xf32>
    tpu.vector_store %arg3[%c0_4, %c0_5, %c0_6], %6 {strides = array<i32>} : memref<1x8x2048xf32, #tpu.memory_space<vmem>>, vector<1x8x2048xf32>,
    return
  }
  func.func @transform_0(%arg0: i32) -> (i32, i32) {
    %c0_i32 = arith.constant 0 : i32
    %c0_i32_0 = arith.constant 0 : i32
    %c0_i32_1 = arith.constant 0 : i32
    return %c0_i32, %c0_i32_0 : i32, i32
  }
  func.func @transform_1(%arg0: i32) -> (i32, i32, i32) {
    %c0_i32 = arith.constant 0 : i32
    %c0_i32_0 = arith.constant 0 : i32
    %c0_i32_1 = arith.constant 0 : i32
    return %arg0, %c0_i32, %c0_i32_0 : i32, i32, i32
  }
  func.func @transform_2(%arg0: i32) -> (i32, i32, i32) {
    %c0_i32 = arith.constant 0 : i32
    %c0_i32_0 = arith.constant 0 : i32
    %c0_i32_1 = arith.constant 0 : i32
    return %arg0, %c0_i32, %c0_i32_0 : i32, i32, i32
  }
}

</mosaic_0001>

<llo_original>
// kernel: tpu_custom_call.1
$region0: #{tpu_custom_call.1}
  #allocation0 [shape = 'u32[]', space=smem, size = 0x4, offset = 0x4, fixed_abs, tag = 'smem constant byte address 0x4 - core index']
  #allocation1 [shape = 'u32[144,128]{1,0:T(1,128)}', space=vmem, size = 0x12000, scoped, tag = 'internal scratch']
  %s0 = inlined_call_operand.hbm [shape: f32[8,56], index: 0, kind: input, shape index: {}]
  %s1 = inlined_call_operand.hbm [shape: f32[2,56,2048], index: 1, kind: input, shape index: {}]
  %s2 = inlined_call_operand.hbm [shape: f32[2,8,2048], index: 2, kind: output, shape index: {}]
  %s3 = sld [smem:[#allocation0]]
  $region49: #{tpu_custom_call.1} parent=0
    _
  %s5 = ssub.s32 1, %s3
  %s6 = scalar_select 0, %s5, %s3
  $region1: #{tpu_custom_call.1} parent=0
    #allocation2 [shape = 'u8[4096]{0}', space=vmem, size = 0x1000, scoped, tag = 'input window, operand 0, single buffered']
    #allocation3 [shape = 's32[2]{0}', space=sflag, size = 0x8, scoped, tag = 'scoped memory for tpu_custom_call.1']
    #allocation4 [shape = 's32[2]{0}', space=sflag, size = 0x8, scoped, tag = 'scoped memory for tpu_custom_call.1']
    #allocation5 [shape = 'u8[917504]{0}', space=vmem, size = 0xe0000, scoped, tag = 'input window, operand 1']
    #allocation6 [shape = 's32[2]{0}', space=sflag, size = 0x8, scoped, tag = 'scoped memory for tpu_custom_call.1']
    #allocation7 [shape = 'u8[131072]{0}', space=vmem, size = 0x20000, scoped, tag = 'output window, operand 0']
    %7 = vsyncpa [#allocation3], 0
    %8 = vsyncpa [#allocation6], 0
    %s9 = scalar_lea.sflag [#allocation6], 1
    %10 = vsyncpa %s9, 0
    %11 = vsyncpa [#allocation4], 0
    %s12 = scalar_lea.sflag [#allocation4], 1
    %13 = vsyncpa %s12, 0
    loop: start=0, step=1, limit=4
    $region2: #{tpu_custom_call.1} parent=1 // loop_pre_header
      _
    $region3: #{tpu_custom_call.1} parent=1 // loop_header
      %s15 = sphi 0, %s19
      %p16 = scmp.ge.s32.totalorder %s15, 4
      %s23 = sphi 0, %s23
      %s25 = sphi 0, %s23
      %s26 = sphi 0, %s25
      %s40 = sphi 0, %s26
      %s46 = sphi 0, %s48
      %s49 = sphi 0, %s46
      %s50 = sphi 0, %s49
      %s66 = sphi 0, %s50
      %s72 = sphi 0, %s74
      %s75 = sphi 0, %s72
      %s76 = sphi 0, %s75
      %s92 = sphi 0, %s76
    $region4: #{tpu_custom_call.1} parent=1 // loop_header_branch
      %18 = sbr.rel (%p16) target = $region8
    $region5: #{tpu_custom_call.1} parent=1 // loop_body
      %s20 = ssub.s32 %s15, 1
      %s21 = ssub.s32 %s15, 2
      %s22 = sadd.s32 %s15, 1
      %s24 = sadd.s32 %s23, 1
      %p27 = scmp.eq.s32.totalorder %s15, 1
      %p28 = scmp.ne.s32.totalorder %s23, %s25
      %p29 = scmp.eq.s32.totalorder %s15, 0
      %p30 = por %p28, %p29
      %p31 = scmp.ne.s32.totalorder %s23, %s25
      %p32 = scmp.eq.s32.totalorder %s20, 1
      %p33 = por %p31, %p32
      %p34 = scmp.ne.s32.totalorder %s25, %s26
      %p35 = scmp.eq.s32.totalorder %s20, 0
      %p36 = por %p34, %p35
      %p37 = scmp.ne.s32.totalorder %s25, %s26
      %p38 = scmp.eq.s32.totalorder %s21, 1
      %p39 = por %p37, %p38
      %p41 = scmp.ne.s32.totalorder %s26, %s40
      %p42 = scmp.eq.s32.totalorder %s21, 0
      %p43 = por %p41, %p42
      %s44 = ssub.s32 %s15, %s22
      %p45 = scmp.eq.s32.totalorder %s44, 0
      %s47 = sadd.s32 %s46, 1
      %s48 = scalar_select %p45, %s46, %s47
      %p51 = pneg %p45
      %p52 = scmp.eq.s32.totalorder %s15, 1
      %p53 = por %p51, %p52
      %p54 = scmp.ne.s32.totalorder %s46, %s49
      %p55 = scmp.eq.s32.totalorder %s15, 0
      %p56 = por %p54, %p55
      %p57 = scmp.ne.s32.totalorder %s46, %s49
      %p58 = scmp.eq.s32.totalorder %s20, 1
      %p59 = por %p57, %p58
      %p60 = scmp.ne.s32.totalorder %s49, %s50
      %p61 = scmp.eq.s32.totalorder %s20, 0
      %p62 = por %p60, %p61
      %p63 = scmp.ne.s32.totalorder %s49, %s50
      %p64 = scmp.eq.s32.totalorder %s21, 1
      %p65 = por %p63, %p64
      %p67 = scmp.ne.s32.totalorder %s50, %s66
      %p68 = scmp.eq.s32.totalorder %s21, 0
      %p69 = por %p67, %p68
      %s70 = ssub.s32 %s15, %s22
      %p71 = scmp.eq.s32.totalorder %s70, 0
      %s73 = sadd.s32 %s72, 1
      %s74 = scalar_select %p71, %s72, %s73
      %p77 = pneg %p71
      %p78 = scmp.eq.s32.totalorder %s15, 1
      %p79 = por %p77, %p78
      %p80 = scmp.ne.s32.totalorder %s72, %s75
      %p81 = scmp.eq.s32.totalorder %s15, 0
      %p82 = por %p80, %p81
      %p83 = scmp.ne.s32.totalorder %s72, %s75
      %p84 = scmp.eq.s32.totalorder %s20, 1
      %p85 = por %p83, %p84
      %p86 = scmp.ne.s32.totalorder %s75, %s76
      %p87 = scmp.eq.s32.totalorder %s20, 0
      %p88 = por %p86, %p87
      %p89 = scmp.ne.s32.totalorder %s75, %s76
      %p90 = scmp.eq.s32.totalorder %s21, 1
      %p91 = por %p89, %p90
      %p93 = scmp.ne.s32.totalorder %s76, %s92
      %p94 = scmp.eq.s32.totalorder %s21, 0
      %p95 = por %p93, %p94
      %p96 = scmp.le.s32.totalorder 1, %s15
      %p97 = scmp.lt.s32.totalorder %s15, 3
      %p98 = pnand %p96, %p97
      %p99 = pneg %p98
      // Predicated region
      $region9: #{tpu_custom_call.1} parent=5 // pred_check
        _
      $region10: #{tpu_custom_call.1} parent=5 // pred_check_branch
        %101 = sbr.rel (%p98) target = $region12
      $region11: #{tpu_custom_call.1} parent=5 // pred_region
        %s102 = ssub.s32 %s15, 1
        // Predicated region
        $region13: #{tpu_custom_call.1} parent=11 // pred_check
          %p103 = pneg %p36
        $region14: #{tpu_custom_call.1} parent=11 // pred_check_branch
          %105 = sbr.rel (%p103) target = $region16
        $region15: #{tpu_custom_call.1} parent=11 // pred_region
          %s107 = ssub.s32 128, 128
          %108 = vsyncadd [#allocation3], %s107
          %s110 = sshll.u32 [#allocation2], 4
          %s111 = int_to_ptr.vmem [resolvable:$true] %s110
          %113 = dma.hbm_to_vmem [thread:$0]  %s0, 128, %s111, [#allocation3]
        $region16: #{tpu_custom_call.1} parent=11 // pred_fallthru
          _
      $region12: #{tpu_custom_call.1} parent=5 // pred_fallthru
        _
      %p114 = scmp.lt.s32.totalorder %s15, 2
      // Predicated region
      $region17: #{tpu_custom_call.1} parent=5 // pred_check
        %p115 = pneg %p114
      $region18: #{tpu_custom_call.1} parent=5 // pred_check_branch
        %117 = sbr.rel (%p115) target = $region20
      $region19: #{tpu_custom_call.1} parent=5 // pred_region
        // Predicated region
        $region21: #{tpu_custom_call.1} parent=19 // pred_check
          %p118 = pneg %p56
        $region22: #{tpu_custom_call.1} parent=19 // pred_check_branch
          %120 = sbr.rel (%p118) target = $region24
        $region23: #{tpu_custom_call.1} parent=19 // pred_region
          %s121 = sand.u32 %s46, 1
          %s122 = scalar_lea.sflag [#allocation6], %s121
          %s123 = sand.u32 %s46, 1
          %s124 = smul.addr %s123, 896
          %s125 = scalar_lea.vmem [#allocation5], %s124
          %s127 = ssub.s32 14336, 14336
          %128 = vsyncadd %s122, %s127
          %s129 = smul.addr %s15, 112
          %s130 = smul.addr %s129, 128
          %s131 = scalar_lea.hbm %s1, %s130
          %s132 = sshll.u32 %s125, 4
          %s133 = int_to_ptr.vmem [resolvable:$true] %s132
          %138 = dma.hbm_to_vmem [thread:$0]  %s131, 14336, %s133, %s122, 2048, 2048, 128
        $region24: #{tpu_custom_call.1} parent=19 // pred_fallthru
          _
      $region20: #{tpu_custom_call.1} parent=5 // pred_fallthru
        _
      %p139 = scmp.le.s32.totalorder 1, %s15
      %p140 = scmp.lt.s32.totalorder %s15, 3
      %p141 = pnand %p139, %p140
      %p142 = pneg %p141
      // Predicated region
      $region25: #{tpu_custom_call.1} parent=5 // pred_check
        _
      $region26: #{tpu_custom_call.1} parent=5 // pred_check_branch
        %144 = sbr.rel (%p141) target = $region28
      $region27: #{tpu_custom_call.1} parent=5 // pred_region
        %s145 = ssub.s32 %s15, 1
        // Predicated region
        $region29: #{tpu_custom_call.1} parent=27 // pred_check
          %p146 = pneg %p36
        $region30: #{tpu_custom_call.1} parent=27 // pred_check_branch
          %148 = sbr.rel (%p146) target = $region32
        $region31: #{tpu_custom_call.1} parent=27 // pred_region
          %149 = dma.done [#allocation3], 128
        $region32: #{tpu_custom_call.1} parent=27 // pred_fallthru
          _
        %s150 = sand.u32 %s49, 1
        %s151 = scalar_lea.sflag [#allocation6], %s150
        %s152 = sand.u32 %s49, 1
        %s153 = smul.addr %s152, 896
        %s154 = scalar_lea.vmem [#allocation5], %s153
        // Predicated region
        $region33: #{tpu_custom_call.1} parent=27 // pred_check
          %p155 = pneg %p62
        $region34: #{tpu_custom_call.1} parent=27 // pred_check_branch
          %157 = sbr.rel (%p155) target = $region36
        $region35: #{tpu_custom_call.1} parent=27 // pred_region
          %158 = dma.done %s151, 14336
        $region36: #{tpu_custom_call.1} parent=27 // pred_fallthru
          _
        %p159 = pneg %p36
        %p160 = pneg %p33
        %s161 = sand.u32 %s49, 1
        %s162 = scalar_lea.sflag [#allocation6], %s161
        %s163 = sand.u32 %s49, 1
        %s164 = smul.addr %s163, 896
        %s165 = scalar_lea.vmem [#allocation5], %s164
        %p166 = pneg %p62
        %p167 = pneg %p59
        %p168 = pneg %p88
        %p169 = pneg %p85
        %s170 = sand.u32 %s75, 1
        %s171 = scalar_lea.sflag [#allocation4], %s170
        %s172 = sand.u32 %s75, 1
        %s173 = smul.addr %s172, 128
        %s174 = scalar_lea.vmem [#allocation7], %s173
        %v175 = vld [vmem:[#allocation2] sm:$0xff]
        %v176 = vld [vmem:[%s154] sm:$0xff]
        %v177 = vld [vmem:[%s154 + $0x8] sm:$0xff]
        %v178 = vld [vmem:[%s154 + $0x10] sm:$0xff]
        %v179 = vld [vmem:[%s154 + $0x18] sm:$0xff]
        %v180 = vld [vmem:[%s154 + $0x20] sm:$0xff]
        %v181 = vld [vmem:[%s154 + $0x28] sm:$0xff]
        %v182 = vld [vmem:[%s154 + $0x30] sm:$0xff]
        %v183 = vld [vmem:[%s154 + $0x38] sm:$0xff]
        %v184 = vld [vmem:[%s154 + $0x40] sm:$0xff]
        %v185 = vld [vmem:[%s154 + $0x48] sm:$0xff]
        %v186 = vld [vmem:[%s154 + $0x50] sm:$0xff]
        %v187 = vld [vmem:[%s154 + $0x58] sm:$0xff]
        %v188 = vld [vmem:[%s154 + $0x60] sm:$0xff]
        %v189 = vld [vmem:[%s154 + $0x68] sm:$0xff]
        %v190 = vld [vmem:[%s154 + $0x70] sm:$0xff]
        %v191 = vld [vmem:[%s154 + $0x78] sm:$0xff]
        %v192 = vld [vmem:[%s154 + $0x80] sm:$0xff]
        %v193 = vld [vmem:[%s154 + $0x88] sm:$0xff]
        %v194 = vld [vmem:[%s154 + $0x90] sm:$0xff]
        %v195 = vld [vmem:[%s154 + $0x98] sm:$0xff]
        %v196 = vld [vmem:[%s154 + $0xa0] sm:$0xff]
        %v197 = vld [vmem:[%s154 + $0xa8] sm:$0xff]
        %v198 = vld [vmem:[%s154 + $0xb0] sm:$0xff]
        %v199 = vld [vmem:[%s154 + $0xb8] sm:$0xff]
        %v200 = vld [vmem:[%s154 + $0xc0] sm:$0xff]
        %v201 = vld [vmem:[%s154 + $0xc8] sm:$0xff]
        %v202 = vld [vmem:[%s154 + $0xd0] sm:$0xff]
        %v203 = vld [vmem:[%s154 + $0xd8] sm:$0xff]
        %v204 = vld [vmem:[%s154 + $0xe0] sm:$0xff]
        %v205 = vld [vmem:[%s154 + $0xe8] sm:$0xff]
        %v206 = vld [vmem:[%s154 + $0xf0] sm:$0xff]
        %v207 = vld [vmem:[%s154 + $0xf8] sm:$0xff]
        %v208 = vld [vmem:[%s154 + $0x100] sm:$0xff]
        %v209 = vld [vmem:[%s154 + $0x108] sm:$0xff]
        %v210 = vld [vmem:[%s154 + $0x110] sm:$0xff]
        %v211 = vld [vmem:[%s154 + $0x118] sm:$0xff]
        %v212 = vld [vmem:[%s154 + $0x120] sm:$0xff]
        %v213 = vld [vmem:[%s154 + $0x128] sm:$0xff]
        %v214 = vld [vmem:[%s154 + $0x130] sm:$0xff]
        %v215 = vld [vmem:[%s154 + $0x138] sm:$0xff]
        %v216 = vld [vmem:[%s154 + $0x140] sm:$0xff]
        %v217 = vld [vmem:[%s154 + $0x148] sm:$0xff]
        %v218 = vld [vmem:[%s154 + $0x150] sm:$0xff]
        %v219 = vld [vmem:[%s154 + $0x158] sm:$0xff]
        %v220 = vld [vmem:[%s154 + $0x160] sm:$0xff]
        %v221 = vld [vmem:[%s154 + $0x168] sm:$0xff]
        %v222 = vld [vmem:[%s154 + $0x170] sm:$0xff]
        %v223 = vld [vmem:[%s154 + $0x178] sm:$0xff]
        %v224 = vld [vmem:[%s154 + $0x180] sm:$0xff]
        %v225 = vld [vmem:[%s154 + $0x188] sm:$0xff]
        %v226 = vld [vmem:[%s154 + $0x190] sm:$0xff]
        %v227 = vld [vmem:[%s154 + $0x198] sm:$0xff]
        %v228 = vld [vmem:[%s154 + $0x1a0] sm:$0xff]
        %v229 = vld [vmem:[%s154 + $0x1a8] sm:$0xff]
        %v230 = vld [vmem:[%s154 + $0x1b0] sm:$0xff]
        %v231 = vld [vmem:[%s154 + $0x1b8] sm:$0xff]
        %v232 = vld [vmem:[%s154 + $0x1c0] sm:$0xff]
        %v233 = vld [vmem:[%s154 + $0x1c8] sm:$0xff]
        %v234 = vld [vmem:[%s154 + $0x1d0] sm:$0xff]
        %v235 = vld [vmem:[%s154 + $0x1d8] sm:$0xff]
        %v236 = vld [vmem:[%s154 + $0x1e0] sm:$0xff]
        %v237 = vld [vmem:[%s154 + $0x1e8] sm:$0xff]
        %v238 = vld [vmem:[%s154 + $0x1f0] sm:$0xff]
        %v239 = vld [vmem:[%s154 + $0x1f8] sm:$0xff]
        %v240 = vld [vmem:[%s154 + $0x200] sm:$0xff]
        %v241 = vld [vmem:[%s154 + $0x208] sm:$0xff]
        %v242 = vld [vmem:[%s154 + $0x210] sm:$0xff]
        %v243 = vld [vmem:[%s154 + $0x218] sm:$0xff]
        %v244 = vld [vmem:[%s154 + $0x220] sm:$0xff]
        %v245 = vld [vmem:[%s154 + $0x228] sm:$0xff]
        %v246 = vld [vmem:[%s154 + $0x230] sm:$0xff]
        %v247 = vld [vmem:[%s154 + $0x238] sm:$0xff]
        %v248 = vld [vmem:[%s154 + $0x240] sm:$0xff]
        %v249 = vld [vmem:[%s154 + $0x248] sm:$0xff]
        %v250 = vld [vmem:[%s154 + $0x250] sm:$0xff]
        %v251 = vld [vmem:[%s154 + $0x258] sm:$0xff]
        %v252 = vld [vmem:[%s154 + $0x260] sm:$0xff]
        %v253 = vld [vmem:[%s154 + $0x268] sm:$0xff]
        %v254 = vld [vmem:[%s154 + $0x270] sm:$0xff]
        %v255 = vld [vmem:[%s154 + $0x278] sm:$0xff]
        %v256 = vld [vmem:[%s154 + $0x280] sm:$0xff]
        %v257 = vld [vmem:[%s154 + $0x288] sm:$0xff]
        %v258 = vld [vmem:[%s154 + $0x290] sm:$0xff]
        %v259 = vld [vmem:[%s154 + $0x298] sm:$0xff]
        %v260 = vld [vmem:[%s154 + $0x2a0] sm:$0xff]
        %v261 = vld [vmem:[%s154 + $0x2a8] sm:$0xff]
        %v262 = vld [vmem:[%s154 + $0x2b0] sm:$0xff]
        %v263 = vld [vmem:[%s154 + $0x2b8] sm:$0xff]
        %v264 = vld [vmem:[%s154 + $0x2c0] sm:$0xff]
        %v265 = vld [vmem:[%s154 + $0x2c8] sm:$0xff]
        %v266 = vld [vmem:[%s154 + $0x2d0] sm:$0xff]
        %v267 = vld [vmem:[%s154 + $0x2d8] sm:$0xff]
        %v268 = vld [vmem:[%s154 + $0x2e0] sm:$0xff]
        %v269 = vld [vmem:[%s154 + $0x2e8] sm:$0xff]
        %v270 = vld [vmem:[%s154 + $0x2f0] sm:$0xff]
        %v271 = vld [vmem:[%s154 + $0x2f8] sm:$0xff]
        %v272 = vld [vmem:[%s154 + $0x300] sm:$0xff]
        %v273 = vld [vmem:[%s154 + $0x308] sm:$0xff]
        %v274 = vld [vmem:[%s154 + $0x310] sm:$0xff]
        %v275 = vld [vmem:[%s154 + $0x318] sm:$0xff]
        %v276 = vld [vmem:[%s154 + $0x320] sm:$0xff]
        %v277 = vld [vmem:[%s154 + $0x328] sm:$0xff]
        %v278 = vld [vmem:[%s154 + $0x330] sm:$0xff]
        %v279 = vld [vmem:[%s154 + $0x338] sm:$0xff]
        %v280 = vld [vmem:[%s154 + $0x340] sm:$0xff]
        %v281 = vld [vmem:[%s154 + $0x348] sm:$0xff]
        %v282 = vld [vmem:[%s154 + $0x350] sm:$0xff]
        %v283 = vld [vmem:[%s154 + $0x358] sm:$0xff]
        %v284 = vld [vmem:[%s154 + $0x360] sm:$0xff]
        %v285 = vld [vmem:[%s154 + $0x368] sm:$0xff]
        %v286 = vld [vmem:[%s154 + $0x370] sm:$0xff]
        %v287 = vld [vmem:[%s154 + $0x378] sm:$0xff]
        %vm288 = vcmask 457728
        %v290 = vsel %vm288, %v175, 0
        %292 = vmatprep.subr.mxu0 %v177
        %293 = vmatpush1.msra.mxu0 %v176
        %294 = vmatprep.subr.mxu0 %v193
        %295 = vmatpush1.msra.mxu0 %v192
        %296 = vmatprep.subr.mxu0 %v209
        %297 = vmatpush1.msra.mxu0 %v208
        %298 = vmatprep.subr.mxu0 %v225
        %299 = vmatpush1.msra.mxu0 %v224
        %300 = vmatprep.subr.mxu0 %v241
        %301 = vmatpush1.msra.mxu0 %v240
        %302 = vmatprep.subr.mxu0 %v257
        %303 = vmatpush1.msra.mxu0 %v256
        %304 = vmatprep.subr.mxu0 %v273
        %305 = vmatpush1.msra.mxu0 %v272
        %306 = vmatprep.subr.mxu0 0.0
        %307 = vmatpush1.msra.mxu0 0.0
        %308 = vmatprep.subr.mxu0 0.0
        %309 = vmatpush1.msra.mxu0 0.0
        %310 = vmatprep.subr.mxu0 0.0
        %311 = vmatpush1.msra.mxu0 0.0
        %312 = vmatprep.subr.mxu0 0.0
        %313 = vmatpush1.msra.mxu0 0.0
        %314 = vmatprep.subr.mxu0 0.0
        %315 = vmatpush1.msra.mxu0 0.0
        %316 = vmatprep.subr.mxu0 0.0
        %317 = vmatpush1.msra.mxu0 0.0
        %318 = vmatprep.subr.mxu0 0.0
        %319 = vmatpush1.msra.mxu0 0.0
        %320 = vmatprep.subr.mxu0 0.0
        %321 = vmatpush1.msra.mxu0 0.0
        %322 = vmatprep.subr.mxu0 0.0
        %323 = vmatpush1.msra.mxu0 0.0
        %324 = vmatprep.subr.mxu0 0.0
        %325 = vmatpush1.msra.mxu0 0.0
        %326 = vmatprep.subr.mxu0 0.0
        %327 = vmatpush1.msra.mxu0 0.0
        %328 = vmatprep.subr.mxu0 0.0
        %329 = vmatpush1.msra.mxu0 0.0
        %330 = vmatprep.subr.mxu0 0.0
        %331 = vmatpush1.msra.mxu0 0.0
        %332 = vmatprep.subr.mxu0 0.0
        %333 = vmatpush1.msra.mxu0 0.0
        %334 = vmatprep.subr.mxu0 0.0
        %335 = vmatpush1.msra.mxu0 0.0
        %336 = vmatprep.subr.mxu0 0.0
        %337 = vmatpush1.msra.mxu0 0.0
        %338 = vmatprep.subr.mxu0 0.0
        %339 = vmatpush1.msra.mxu0 0.0
        %340 = vmatprep.subr.mxu0 0.0
        %341 = vmatpush1.msra.mxu0 0.0
        %342 = vmatprep.subr.mxu0 0.0
        %343 = vmatpush1.msra.mxu0 0.0
        %344 = vmatprep.subr.mxu0 0.0
        %345 = vmatpush1.msra.mxu0 0.0
        %346 = vmatprep.subr.mxu0 0.0
        %347 = vmatpush1.msra.mxu0 0.0
        %348 = vmatprep.subr.mxu0 0.0
        %349 = vmatpush1.msra.mxu0 0.0
        %350 = vmatprep.subr.mxu0 0.0
        %351 = vmatpush1.msra.mxu0 0.0
        %352 = vmatprep.subr.mxu0 0.0
        %353 = vmatpush1.msra.mxu0 0.0
        %354 = vmatprep.subr.mxu0 0.0
        %355 = vmatpush1.msra.mxu0 0.0
        %356 = vmatprep.mubr.f32.mxu0 0.0
        %357 = vmatmul.mubr.f32.gmra.mrb[0].mxu0 %v290
        %v358 = vpop.f32.mrb[0].mxu0
        %v359 = vadd.f32 0.0, %v358
        %v360 = vpop.f32.mrb[0].mxu0
        %v361 = vadd.f32 0.0, %v360
        %362 = vdwg.mxu0
        %363 = vmatprep.subr.mxu0 %v179
        %364 = vmatpush1.msra.mxu0 %v178
        %365 = vmatprep.subr.mxu0 %v195
        %366 = vmatpush1.msra.mxu0 %v194
        %367 = vmatprep.subr.mxu0 %v211
        %368 = vmatpush1.msra.mxu0 %v210
        %369 = vmatprep.subr.mxu0 %v227
        %370 = vmatpush1.msra.mxu0 %v226
        %371 = vmatprep.subr.mxu0 %v243
        %372 = vmatpush1.msra.mxu0 %v242
        %373 = vmatprep.subr.mxu0 %v259
        %374 = vmatpush1.msra.mxu0 %v258
        %375 = vmatprep.subr.mxu0 %v275
        %376 = vmatpush1.msra.mxu0 %v274
        %377 = vmatprep.subr.mxu0 0.0
        %378 = vmatpush1.msra.mxu0 0.0
        %379 = vmatprep.subr.mxu0 0.0
        %380 = vmatpush1.msra.mxu0 0.0
        %381 = vmatprep.subr.mxu0 0.0
        %382 = vmatpush1.msra.mxu0 0.0
        %383 = vmatprep.subr.mxu0 0.0
        %384 = vmatpush1.msra.mxu0 0.0
        %385 = vmatprep.subr.mxu0 0.0
        %386 = vmatpush1.msra.mxu0 0.0
        %387 = vmatprep.subr.mxu0 0.0
        %388 = vmatpush1.msra.mxu0 0.0
        %389 = vmatprep.subr.mxu0 0.0
        %390 = vmatpush1.msra.mxu0 0.0
        %391 = vmatprep.subr.mxu0 0.0
        %392 = vmatpush1.msra.mxu0 0.0
        %393 = vmatprep.subr.mxu0 0.0
        %394 = vmatpush1.msra.mxu0 0.0
        %395 = vmatprep.subr.mxu0 0.0
        %396 = vmatpush1.msra.mxu0 0.0
        %397 = vmatprep.subr.mxu0 0.0
        %398 = vmatpush1.msra.mxu0 0.0
        %399 = vmatprep.subr.mxu0 0.0
        %400 = vmatpush1.msra.mxu0 0.0
        %401 = vmatprep.subr.mxu0 0.0
        %402 = vmatpush1.msra.mxu0 0.0
        %403 = vmatprep.subr.mxu0 0.0
        %404 = vmatpush1.msra.mxu0 0.0
        %405 = vmatprep.subr.mxu0 0.0
        %406 = vmatpush1.msra.mxu0 0.0
        %407 = vmatprep.subr.mxu0 0.0
        %408 = vmatpush1.msra.mxu0 0.0
        %409 = vmatprep.subr.mxu0 0.0
        %410 = vmatpush1.msra.mxu0 0.0
        %411 = vmatprep.subr.mxu0 0.0
        %412 = vmatpush1.msra.mxu0 0.0
        %413 = vmatprep.subr.mxu0 0.0
        %414 = vmatpush1.msra.mxu0 0.0
        %415 = vmatprep.subr.mxu0 0.0
        %416 = vmatpush1.msra.mxu0 0.0
        %417 = vmatprep.subr.mxu0 0.0
        %418 = vmatpush1.msra.mxu0 0.0
        %419 = vmatprep.subr.mxu0 0.0
        %420 = vmatpush1.msra.mxu0 0.0
        %421 = vmatprep.subr.mxu0 0.0
        %422 = vmatpush1.msra.mxu0 0.0
        %423 = vmatprep.subr.mxu0 0.0
        %424 = vmatpush1.msra.mxu0 0.0
        %425 = vmatprep.subr.mxu0 0.0
        %426 = vmatpush1.msra.mxu0 0.0
        %427 = vmatprep.mubr.f32.mxu0 0.0
        %428 = vmatmul.mubr.f32.gmra.mrb[0].mxu0 %v290
        %v429 = vpop.f32.mrb[0].mxu0
        %v430 = vadd.f32 0.0, %v429
        %v431 = vpop.f32.mrb[0].mxu0
        %v432 = vadd.f32 0.0, %v431
        %433 = vdwg.mxu0
        %434 = vmatprep.subr.mxu0 %v181
        %435 = vmatpush1.msra.mxu0 %v180
        %436 = vmatprep.subr.mxu0 %v197
        %437 = vmatpush1.msra.mxu0 %v196
        %438 = vmatprep.subr.mxu0 %v213
        %439 = vmatpush1.msra.mxu0 %v212
        %440 = vmatprep.subr.mxu0 %v229
        %441 = vmatpush1.msra.mxu0 %v228
        %442 = vmatprep.subr.mxu0 %v245
        %443 = vmatpush1.msra.mxu0 %v244
        %444 = vmatprep.subr.mxu0 %v261
        %445 = vmatpush1.msra.mxu0 %v260
        %446 = vmatprep.subr.mxu0 %v277
        %447 = vmatpush1.msra.mxu0 %v276
        %448 = vmatprep.subr.mxu0 0.0
        %449 = vmatpush1.msra.mxu0 0.0
        %450 = vmatprep.subr.mxu0 0.0
        %451 = vmatpush1.msra.mxu0 0.0
        %452 = vmatprep.subr.mxu0 0.0
        %453 = vmatpush1.msra.mxu0 0.0
        %454 = vmatprep.subr.mxu0 0.0
        %455 = vmatpush1.msra.mxu0 0.0
        %456 = vmatprep.subr.mxu0 0.0
        %457 = vmatpush1.msra.mxu0 0.0
        %458 = vmatprep.subr.mxu0 0.0
        %459 = vmatpush1.msra.mxu0 0.0
        %460 = vmatprep.subr.mxu0 0.0
        %461 = vmatpush1.msra.mxu0 0.0
        %462 = vmatprep.subr.mxu0 0.0
        %463 = vmatpush1.msra.mxu0 0.0
        %464 = vmatprep.subr.mxu0 0.0
        %465 = vmatpush1.msra.mxu0 0.0
        %466 = vmatprep.subr.mxu0 0.0
        %467 = vmatpush1.msra.mxu0 0.0
        %468 = vmatprep.subr.mxu0 0.0
        %469 = vmatpush1.msra.mxu0 0.0
        %470 = vmatprep.subr.mxu0 0.0
        %471 = vmatpush1.msra.mxu0 0.0
        %472 = vmatprep.subr.mxu0 0.0
        %473 = vmatpush1.msra.mxu0 0.0
        %474 = vmatprep.subr.mxu0 0.0
        %475 = vmatpush1.msra.mxu0 0.0
        %476 = vmatprep.subr.mxu0 0.0
        %477 = vmatpush1.msra.mxu0 0.0
        %478 = vmatprep.subr.mxu0 0.0
        %479 = vmatpush1.msra.mxu0 0.0
        %480 = vmatprep.subr.mxu0 0.0
        %481 = vmatpush1.msra.mxu0 0.0
        %482 = vmatprep.subr.mxu0 0.0
        %483 = vmatpush1.msra.mxu0 0.0
        %484 = vmatprep.subr.mxu0 0.0
        %485 = vmatpush1.msra.mxu0 0.0
        %486 = vmatprep.subr.mxu0 0.0
        %487 = vmatpush1.msra.mxu0 0.0
        %488 = vmatprep.subr.mxu0 0.0
        %489 = vmatpush1.msra.mxu0 0.0
        %490 = vmatprep.subr.mxu0 0.0
        %491 = vmatpush1.msra.mxu0 0.0
        %492 = vmatprep.subr.mxu0 0.0
        %493 = vmatpush1.msra.mxu0 0.0
        %494 = vmatprep.subr.mxu0 0.0
        %495 = vmatpush1.msra.mxu0 0.0
        %496 = vmatprep.subr.mxu0 0.0
        %497 = vmatpush1.msra.mxu0 0.0
        %498 = vmatprep.mubr.f32.mxu0 0.0
        %499 = vmatmul.mubr.f32.gmra.mrb[0].mxu0 %v290
        %v500 = vpop.f32.mrb[0].mxu0
        %v501 = vadd.f32 0.0, %v500
        %v502 = vpop.f32.mrb[0].mxu0
        %v503 = vadd.f32 0.0, %v502
        %504 = vdwg.mxu0
        %505 = vmatprep.subr.mxu0 %v183
        %506 = vmatpush1.msra.mxu0 %v182
        %507 = vmatprep.subr.mxu0 %v199
        %508 = vmatpush1.msra.mxu0 %v198
        %509 = vmatprep.subr.mxu0 %v215
        %510 = vmatpush1.msra.mxu0 %v214
        %511 = vmatprep.subr.mxu0 %v231
        %512 = vmatpush1.msra.mxu0 %v230
        %513 = vmatprep.subr.mxu0 %v247
        %514 = vmatpush1.msra.mxu0 %v246
        %515 = vmatprep.subr.mxu0 %v263
        %516 = vmatpush1.msra.mxu0 %v262
        %517 = vmatprep.subr.mxu0 %v279
        %518 = vmatpush1.msra.mxu0 %v278
        %519 = vmatprep.subr.mxu0 0.0
        %520 = vmatpush1.msra.mxu0 0.0
        %521 = vmatprep.subr.mxu0 0.0
        %522 = vmatpush1.msra.mxu0 0.0
        %523 = vmatprep.subr.mxu0 0.0
        %524 = vmatpush1.msra.mxu0 0.0
        %525 = vmatprep.subr.mxu0 0.0
        %526 = vmatpush1.msra.mxu0 0.0
        %527 = vmatprep.subr.mxu0 0.0
        %528 = vmatpush1.msra.mxu0 0.0
        %529 = vmatprep.subr.mxu0 0.0
        %530 = vmatpush1.msra.mxu0 0.0
        %531 = vmatprep.subr.mxu0 0.0
        %532 = vmatpush1.msra.mxu0 0.0
        %533 = vmatprep.subr.mxu0 0.0
        %534 = vmatpush1.msra.mxu0 0.0
        %535 = vmatprep.subr.mxu0 0.0
        %536 = vmatpush1.msra.mxu0 0.0
        %537 = vmatprep.subr.mxu0 0.0
        %538 = vmatpush1.msra.mxu0 0.0
        %539 = vmatprep.subr.mxu0 0.0
        %540 = vmatpush1.msra.mxu0 0.0
        %541 = vmatprep.subr.mxu0 0.0
        %542 = vmatpush1.msra.mxu0 0.0
        %543 = vmatprep.subr.mxu0 0.0
        %544 = vmatpush1.msra.mxu0 0.0
        %545 = vmatprep.subr.mxu0 0.0
        %546 = vmatpush1.msra.mxu0 0.0
        %547 = vmatprep.subr.mxu0 0.0
        %548 = vmatpush1.msra.mxu0 0.0
        %549 = vmatprep.subr.mxu0 0.0
        %550 = vmatpush1.msra.mxu0 0.0
        %551 = vmatprep.subr.mxu0 0.0
        %552 = vmatpush1.msra.mxu0 0.0
        %553 = vmatprep.subr.mxu0 0.0
        %554 = vmatpush1.msra.mxu0 0.0
        %555 = vmatprep.subr.mxu0 0.0
        %556 = vmatpush1.msra.mxu0 0.0
        %557 = vmatprep.subr.mxu0 0.0
        %558 = vmatpush1.msra.mxu0 0.0
        %559 = vmatprep.subr.mxu0 0.0
        %560 = vmatpush1.msra.mxu0 0.0
        %561 = vmatprep.subr.mxu0 0.0
        %562 = vmatpush1.msra.mxu0 0.0
        %563 = vmatprep.subr.mxu0 0.0
        %564 = vmatpush1.msra.mxu0 0.0
        %565 = vmatprep.subr.mxu0 0.0
        %566 = vmatpush1.msra.mxu0 0.0
        %567 = vmatprep.subr.mxu0 0.0
        %568 = vmatpush1.msra.mxu0 0.0
        %569 = vmatprep.mubr.f32.mxu0 0.0
        %570 = vmatmul.mubr.f32.gmra.mrb[0].mxu0 %v290
        %v571 = vpop.f32.mrb[0].mxu0
        %v572 = vadd.f32 0.0, %v571
        %v573 = vpop.f32.mrb[0].mxu0
        %v574 = vadd.f32 0.0, %v573
        %575 = vdwg.mxu0
        %576 = vmatprep.subr.mxu0 %v185
        %577 = vmatpush1.msra.mxu0 %v184
        %578 = vmatprep.subr.mxu0 %v201
        %579 = vmatpush1.msra.mxu0 %v200
        %580 = vmatprep.subr.mxu0 %v217
        %581 = vmatpush1.msra.mxu0 %v216
        %582 = vmatprep.subr.mxu0 %v233
        %583 = vmatpush1.msra.mxu0 %v232
        %584 = vmatprep.subr.mxu0 %v249
        %585 = vmatpush1.msra.mxu0 %v248
        %586 = vmatprep.subr.mxu0 %v265
        %587 = vmatpush1.msra.mxu0 %v264
        %588 = vmatprep.subr.mxu0 %v281
        %589 = vmatpush1.msra.mxu0 %v280
        %590 = vmatprep.subr.mxu0 0.0
        %591 = vmatpush1.msra.mxu0 0.0
        %592 = vmatprep.subr.mxu0 0.0
        %593 = vmatpush1.msra.mxu0 0.0
        %594 = vmatprep.subr.mxu0 0.0
        %595 = vmatpush1.msra.mxu0 0.0
        %596 = vmatprep.subr.mxu0 0.0
        %597 = vmatpush1.msra.mxu0 0.0
        %598 = vmatprep.subr.mxu0 0.0
        %599 = vmatpush1.msra.mxu0 0.0
        %600 = vmatprep.subr.mxu0 0.0
        %601 = vmatpush1.msra.mxu0 0.0
        %602 = vmatprep.subr.mxu0 0.0
        %603 = vmatpush1.msra.mxu0 0.0
        %604 = vmatprep.subr.mxu0 0.0
        %605 = vmatpush1.msra.mxu0 0.0
        %606 = vmatprep.subr.mxu0 0.0
        %607 = vmatpush1.msra.mxu0 0.0
        %608 = vmatprep.subr.mxu0 0.0
        %609 = vmatpush1.msra.mxu0 0.0
        %610 = vmatprep.subr.mxu0 0.0
        %611 = vmatpush1.msra.mxu0 0.0
        %612 = vmatprep.subr.mxu0 0.0
        %613 = vmatpush1.msra.mxu0 0.0
        %614 = vmatprep.subr.mxu0 0.0
        %615 = vmatpush1.msra.mxu0 0.0
        %616 = vmatprep.subr.mxu0 0.0
        %617 = vmatpush1.msra.mxu0 0.0
        %618 = vmatprep.subr.mxu0 0.0
        %619 = vmatpush1.msra.mxu0 0.0
        %620 = vmatprep.subr.mxu0 0.0
        %621 = vmatpush1.msra.mxu0 0.0
        %622 = vmatprep.subr.mxu0 0.0
        %623 = vmatpush1.msra.mxu0 0.0
        %624 = vmatprep.subr.mxu0 0.0
        %625 = vmatpush1.msra.mxu0 0.0
        %626 = vmatprep.subr.mxu0 0.0
        %627 = vmatpush1.msra.mxu0 0.0
        %628 = vmatprep.subr.mxu0 0.0
        %629 = vmatpush1.msra.mxu0 0.0
        %630 = vmatprep.subr.mxu0 0.0
        %631 = vmatpush1.msra.mxu0 0.0
        %632 = vmatprep.subr.mxu0 0.0
        %633 = vmatpush1.msra.mxu0 0.0
        %634 = vmatprep.subr.mxu0 0.0
        %635 = vmatpush1.msra.mxu0 0.0
        %636 = vmatprep.subr.mxu0 0.0
        %637 = vmatpush1.msra.mxu0 0.0
        %638 = vmatprep.subr.mxu0 0.0
        %639 = vmatpush1.msra.mxu0 0.0
        %640 = vmatprep.mubr.f32.mxu0 0.0
        %641 = vmatmul.mubr.f32.gmra.mrb[0].mxu0 %v290
        %v642 = vpop.f32.mrb[0].mxu0
        %v643 = vadd.f32 0.0, %v642
        %v644 = vpop.f32.mrb[0].mxu0
        %v645 = vadd.f32 0.0, %v644
        %646 = vdwg.mxu0
        %647 = vmatprep.subr.mxu0 %v187
        %648 = vmatpush1.msra.mxu0 %v186
        %649 = vmatprep.subr.mxu0 %v203
        %650 = vmatpush1.msra.mxu0 %v202
        %651 = vmatprep.subr.mxu0 %v219
        %652 = vmatpush1.msra.mxu0 %v218
        %653 = vmatprep.subr.mxu0 %v235
        %654 = vmatpush1.msra.mxu0 %v234
        %655 = vmatprep.subr.mxu0 %v251
        %656 = vmatpush1.msra.mxu0 %v250
        %657 = vmatprep.subr.mxu0 %v267
        %658 = vmatpush1.msra.mxu0 %v266
        %659 = vmatprep.subr.mxu0 %v283
        %660 = vmatpush1.msra.mxu0 %v282
        %661 = vmatprep.subr.mxu0 0.0
        %662 = vmatpush1.msra.mxu0 0.0
        %663 = vmatprep.subr.mxu0 0.0
        %664 = vmatpush1.msra.mxu0 0.0
        %665 = vmatprep.subr.mxu0 0.0
        %666 = vmatpush1.msra.mxu0 0.0
        %667 = vmatprep.subr.mxu0 0.0
        %668 = vmatpush1.msra.mxu0 0.0
        %669 = vmatprep.subr.mxu0 0.0
        %670 = vmatpush1.msra.mxu0 0.0
        %671 = vmatprep.subr.mxu0 0.0
        %672 = vmatpush1.msra.mxu0 0.0
        %673 = vmatprep.subr.mxu0 0.0
        %674 = vmatpush1.msra.mxu0 0.0
        %675 = vmatprep.subr.mxu0 0.0
        %676 = vmatpush1.msra.mxu0 0.0
        %677 = vmatprep.subr.mxu0 0.0
        %678 = vmatpush1.msra.mxu0 0.0
        %679 = vmatprep.subr.mxu0 0.0
        %680 = vmatpush1.msra.mxu0 0.0
        %681 = vmatprep.subr.mxu0 0.0
        %682 = vmatpush1.msra.mxu0 0.0
        %683 = vmatprep.subr.mxu0 0.0
        %684 = vmatpush1.msra.mxu0 0.0
        %685 = vmatprep.subr.mxu0 0.0
        %686 = vmatpush1.msra.mxu0 0.0
        %687 = vmatprep.subr.mxu0 0.0
        %688 = vmatpush1.msra.mxu0 0.0
        %689 = vmatprep.subr.mxu0 0.0
        %690 = vmatpush1.msra.mxu0 0.0
        %691 = vmatprep.subr.mxu0 0.0
        %692 = vmatpush1.msra.mxu0 0.0
        %693 = vmatprep.subr.mxu0 0.0
        %694 = vmatpush1.msra.mxu0 0.0
        %695 = vmatprep.subr.mxu0 0.0
        %696 = vmatpush1.msra.mxu0 0.0
        %697 = vmatprep.subr.mxu0 0.0
        %698 = vmatpush1.msra.mxu0 0.0
        %699 = vmatprep.subr.mxu0 0.0
        %700 = vmatpush1.msra.mxu0 0.0
        %701 = vmatprep.subr.mxu0 0.0
        %702 = vmatpush1.msra.mxu0 0.0
        %703 = vmatprep.subr.mxu0 0.0
        %704 = vmatpush1.msra.mxu0 0.0
        %705 = vmatprep.subr.mxu0 0.0
        %706 = vmatpush1.msra.mxu0 0.0
        %707 = vmatprep.subr.mxu0 0.0
        %708 = vmatpush1.msra.mxu0 0.0
        %709 = vmatprep.subr.mxu0 0.0
        %710 = vmatpush1.msra.mxu0 0.0
        %711 = vmatprep.mubr.f32.mxu0 0.0
        %712 = vmatmul.mubr.f32.gmra.mrb[0].mxu0 %v290
        %v713 = vpop.f32.mrb[0].mxu0
        %v714 = vadd.f32 0.0, %v713
        %v715 = vpop.f32.mrb[0].mxu0
        %v716 = vadd.f32 0.0, %v715
        %717 = vdwg.mxu0
        %718 = vmatprep.subr.mxu0 %v189
        %719 = vmatpush1.msra.mxu0 %v188
        %720 = vmatprep.subr.mxu0 %v205
        %721 = vmatpush1.msra.mxu0 %v204
        %722 = vmatprep.subr.mxu0 %v221
        %723 = vmatpush1.msra.mxu0 %v220
        %724 = vmatprep.subr.mxu0 %v237
        %725 = vmatpush1.msra.mxu0 %v236
        %726 = vmatprep.subr.mxu0 %v253
        %727 = vmatpush1.msra.mxu0 %v252
        %728 = vmatprep.subr.mxu0 %v269
        %729 = vmatpush1.msra.mxu0 %v268
        %730 = vmatprep.subr.mxu0 %v285
        %731 = vmatpush1.msra.mxu0 %v284
        %732 = vmatprep.subr.mxu0 0.0
        %733 = vmatpush1.msra.mxu0 0.0
        %734 = vmatprep.subr.mxu0 0.0
        %735 = vmatpush1.msra.mxu0 0.0
        %736 = vmatprep.subr.mxu0 0.0
        %737 = vmatpush1.msra.mxu0 0.0
        %738 = vmatprep.subr.mxu0 0.0
        %739 = vmatpush1.msra.mxu0 0.0
        %740 = vmatprep.subr.mxu0 0.0
        %741 = vmatpush1.msra.mxu0 0.0
        %742 = vmatprep.subr.mxu0 0.0
        %743 = vmatpush1.msra.mxu0 0.0
        %744 = vmatprep.subr.mxu0 0.0
        %745 = vmatpush1.msra.mxu0 0.0
        %746 = vmatprep.subr.mxu0 0.0
        %747 = vmatpush1.msra.mxu0 0.0
        %748 = vmatprep.subr.mxu0 0.0
        %749 = vmatpush1.msra.mxu0 0.0
        %750 = vmatprep.subr.mxu0 0.0
        %751 = vmatpush1.msra.mxu0 0.0
        %752 = vmatprep.subr.mxu0 0.0
        %753 = vmatpush1.msra.mxu0 0.0
        %754 = vmatprep.subr.mxu0 0.0
        %755 = vmatpush1.msra.mxu0 0.0
        %756 = vmatprep.subr.mxu0 0.0
        %757 = vmatpush1.msra.mxu0 0.0
        %758 = vmatprep.subr.mxu0 0.0
        %759 = vmatpush1.msra.mxu0 0.0
        %760 = vmatprep.subr.mxu0 0.0
        %761 = vmatpush1.msra.mxu0 0.0
        %762 = vmatprep.subr.mxu0 0.0
        %763 = vmatpush1.msra.mxu0 0.0
        %764 = vmatprep.subr.mxu0 0.0
        %765 = vmatpush1.msra.mxu0 0.0
        %766 = vmatprep.subr.mxu0 0.0
        %767 = vmatpush1.msra.mxu0 0.0
        %768 = vmatprep.subr.mxu0 0.0
        %769 = vmatpush1.msra.mxu0 0.0
        %770 = vmatprep.subr.mxu0 0.0
        %771 = vmatpush1.msra.mxu0 0.0
        %772 = vmatprep.subr.mxu0 0.0
        %773 = vmatpush1.msra.mxu0 0.0
        %774 = vmatprep.subr.mxu0 0.0
        %775 = vmatpush1.msra.mxu0 0.0
        %776 = vmatprep.subr.mxu0 0.0
        %777 = vmatpush1.msra.mxu0 0.0
        %778 = vmatprep.subr.mxu0 0.0
        %779 = vmatpush1.msra.mxu0 0.0
        %780 = vmatprep.subr.mxu0 0.0
        %781 = vmatpush1.msra.mxu0 0.0
        %782 = vmatprep.mubr.f32.mxu0 0.0
        %783 = vmatmul.mubr.f32.gmra.mrb[0].mxu0 %v290
        %v784 = vpop.f32.mrb[0].mxu0
        %v785 = vadd.f32 0.0, %v784
        %v786 = vpop.f32.mrb[0].mxu0
        %v787 = vadd.f32 0.0, %v786
        %788 = vdwg.mxu0
        %789 = vmatprep.subr.mxu0 %v191
        %790 = vmatpush1.msra.mxu0 %v190
        %791 = vmatprep.subr.mxu0 %v207
        %792 = vmatpush1.msra.mxu0 %v206
        %793 = vmatprep.subr.mxu0 %v223
        %794 = vmatpush1.msra.mxu0 %v222
        %795 = vmatprep.subr.mxu0 %v239
        %796 = vmatpush1.msra.mxu0 %v238
        %797 = vmatprep.subr.mxu0 %v255
        %798 = vmatpush1.msra.mxu0 %v254
        %799 = vmatprep.subr.mxu0 %v271
        %800 = vmatpush1.msra.mxu0 %v270
        %801 = vmatprep.subr.mxu0 %v287
        %802 = vmatpush1.msra.mxu0 %v286
        %803 = vmatprep.subr.mxu0 0.0
        %804 = vmatpush1.msra.mxu0 0.0
        %805 = vmatprep.subr.mxu0 0.0
        %806 = vmatpush1.msra.mxu0 0.0
        %807 = vmatprep.subr.mxu0 0.0
        %808 = vmatpush1.msra.mxu0 0.0
        %809 = vmatprep.subr.mxu0 0.0
        %810 = vmatpush1.msra.mxu0 0.0
        %811 = vmatprep.subr.mxu0 0.0
        %812 = vmatpush1.msra.mxu0 0.0
        %813 = vmatprep.subr.mxu0 0.0
        %814 = vmatpush1.msra.mxu0 0.0
        %815 = vmatprep.subr.mxu0 0.0
        %816 = vmatpush1.msra.mxu0 0.0
        %817 = vmatprep.subr.mxu0 0.0
        %818 = vmatpush1.msra.mxu0 0.0
        %819 = vmatprep.subr.mxu0 0.0
        %820 = vmatpush1.msra.mxu0 0.0
        %821 = vmatprep.subr.mxu0 0.0
        %822 = vmatpush1.msra.mxu0 0.0
        %823 = vmatprep.subr.mxu0 0.0
        %824 = vmatpush1.msra.mxu0 0.0
        %825 = vmatprep.subr.mxu0 0.0
        %826 = vmatpush1.msra.mxu0 0.0
        %827 = vmatprep.subr.mxu0 0.0
        %828 = vmatpush1.msra.mxu0 0.0
        %829 = vmatprep.subr.mxu0 0.0
        %830 = vmatpush1.msra.mxu0 0.0
        %831 = vmatprep.subr.mxu0 0.0
        %832 = vmatpush1.msra.mxu0 0.0
        %833 = vmatprep.subr.mxu0 0.0
        %834 = vmatpush1.msra.mxu0 0.0
        %835 = vmatprep.subr.mxu0 0.0
        %836 = vmatpush1.msra.mxu0 0.0
        %837 = vmatprep.subr.mxu0 0.0
        %838 = vmatpush1.msra.mxu0 0.0
        %839 = vmatprep.subr.mxu0 0.0
        %840 = vmatpush1.msra.mxu0 0.0
        %841 = vmatprep.subr.mxu0 0.0
        %842 = vmatpush1.msra.mxu0 0.0
        %843 = vmatprep.subr.mxu0 0.0
        %844 = vmatpush1.msra.mxu0 0.0
        %845 = vmatprep.subr.mxu0 0.0
        %846 = vmatpush1.msra.mxu0 0.0
        %847 = vmatprep.subr.mxu0 0.0
        %848 = vmatpush1.msra.mxu0 0.0
        %849 = vmatprep.subr.mxu0 0.0
        %850 = vmatpush1.msra.mxu0 0.0
        %851 = vmatprep.subr.mxu0 0.0
        %852 = vmatpush1.msra.mxu0 0.0
        %853 = vmatprep.mubr.f32.mxu0 0.0
        %854 = vmatmul.mubr.f32.gmra.mrb[0].mxu0 %v290
        %v855 = vpop.f32.mrb[0].mxu0
        %v856 = vadd.f32 0.0, %v855
        %v857 = vpop.f32.mrb[0].mxu0
        %v858 = vadd.f32 0.0, %v857
        %859 = vdwg.mxu0
        %860 = vst [vmem:[%s174] sm:$0xff] %v359
        %861 = vst [vmem:[%s174 + $0x8] sm:$0xff] %v361
        %862 = vst [vmem:[%s174 + $0x10] sm:$0xff] %v430
        %863 = vst [vmem:[%s174 + $0x18] sm:$0xff] %v432
        %864 = vst [vmem:[%s174 + $0x20] sm:$0xff] %v501
        %865 = vst [vmem:[%s174 + $0x28] sm:$0xff] %v503
        %866 = vst [vmem:[%s174 + $0x30] sm:$0xff] %v572
        %867 = vst [vmem:[%s174 + $0x38] sm:$0xff] %v574
        %868 = vst [vmem:[%s174 + $0x40] sm:$0xff] %v643
        %869 = vst [vmem:[%s174 + $0x48] sm:$0xff] %v645
        %870 = vst [vmem:[%s174 + $0x50] sm:$0xff] %v714
        %871 = vst [vmem:[%s174 + $0x58] sm:$0xff] %v716
        %872 = vst [vmem:[%s174 + $0x60] sm:$0xff] %v785
        %873 = vst [vmem:[%s174 + $0x68] sm:$0xff] %v787
        %874 = vst [vmem:[%s174 + $0x70] sm:$0xff] %v856
        %875 = vst [vmem:[%s174 + $0x78] sm:$0xff] %v858
        %s876 = sand.u32 %s75, 1
        %s877 = scalar_lea.sflag [#allocation4], %s876
        %s878 = sand.u32 %s75, 1
        %s879 = smul.addr %s878, 128
        %s880 = scalar_lea.vmem [#allocation7], %s879
        // Predicated region
        $region37: #{tpu_custom_call.1} parent=27 // pred_check
          %p881 = pneg %p85
        $region38: #{tpu_custom_call.1} parent=27 // pred_check_branch
          %883 = sbr.rel (%p881) target = $region40
        $region39: #{tpu_custom_call.1} parent=27 // pred_region
          %s885 = ssub.s32 2048, 2048
          %886 = vsyncadd %s877, %s885
          %s887 = smul.addr %s20, 16
          %s888 = smul.addr %s887, 128
          %s889 = scalar_lea.hbm %s2, %s888
          %s891 = sshll.u32 %s880, 4
          %s892 = int_to_ptr.vmem [resolvable:$true] %s891
          %894 = dma.vmem_to_hbm [thread:$0]  %s892, 2048, %s889, %s877
        $region40: #{tpu_custom_call.1} parent=27 // pred_fallthru
          _
      $region28: #{tpu_custom_call.1} parent=5 // pred_fallthru
        _
      %p895 = scmp.le.s32.totalorder 2, %s15
      // Predicated region
      $region41: #{tpu_custom_call.1} parent=5 // pred_check
        %p896 = pneg %p895
      $region42: #{tpu_custom_call.1} parent=5 // pred_check_branch
        %898 = sbr.rel (%p896) target = $region44
      $region43: #{tpu_custom_call.1} parent=5 // pred_region
        %s899 = ssub.s32 %s15, 2
        // Predicated region
        $region45: #{tpu_custom_call.1} parent=43 // pred_check
          %p900 = pneg %p91
        $region46: #{tpu_custom_call.1} parent=43 // pred_check_branch
          %902 = sbr.rel (%p900) target = $region48
        $region47: #{tpu_custom_call.1} parent=43 // pred_region
          %s903 = sand.u32 %s76, 1
          %s904 = scalar_lea.sflag [#allocation4], %s903
          %s905 = sand.u32 %s76, 1
          %s906 = smul.addr %s905, 128
          %s907 = scalar_lea.vmem [#allocation7], %s906
          %908 = dma.done %s904, 2048
        $region48: #{tpu_custom_call.1} parent=43 // pred_fallthru
          _
      $region44: #{tpu_custom_call.1} parent=5 // pred_fallthru
        _
    $region6: #{tpu_custom_call.1} parent=1 // loop_footer
      %s19 = sadd.s32 1, %s15
    $region7: #{tpu_custom_call.1} parent=1 // loop_footer_branch
      %14 = sbr.rel target = $region3
    $region8: #{tpu_custom_call.1} parent=1 // loop_exit
      _
    %909 = vsyncpa [#allocation3], 1
    %s910 = scalar_lea.sflag [#allocation3], 1
    %911 = vsyncpa %s910, 1
    %912 = vsyncpa [#allocation6], 1
    %s913 = scalar_lea.sflag [#allocation6], 1
    %914 = vsyncpa %s913, 1
    %915 = vsyncpa [#allocation4], 1
    %s916 = scalar_lea.sflag [#allocation4], 1
    %917 = vsyncpa %s916, 1

</llo_original>
